<compile_context>
chip_gen: v5e
topology: v5e:2x2
jax: 0.10.0
libtpu: 0.0.40
codegen_flags: <defaults>
</compile_context>

<pallas_src>
import functools

import jax
import jax.numpy as jnp
from jax import lax
from jax.experimental import pallas as pl
from jax.experimental.pallas import tpu as pltpu


def _flows_kernel(z_ref, w_ref, uhat_ref, c_ref, wu_ref, b_ref,
                  zout_ref, logdet_ref):
    """All n planar flows applied to one (TILE_B, F) batch tile."""
    n_flows = w_ref.shape[0]
    f32 = jnp.float32

    # P^T = W @ z0^T : (n, TILE_B).  One MXU pass over the tile; the batch axis
    # lands on the 128-wide lane dimension, so everything downstream of it is
    # lane-dense even for small F.  (Same q @ k^T contraction pattern as the
    # flash-attention kernels.)
    pt = lax.dot_general(
        w_ref[...], z_ref[...],
        dimension_numbers=(((1,), (1,)), ((), ())),       # W (n,F) . z0(TB,F)^T
        preferred_element_type=f32)

    t_rows = []
    ld_rows = []
    # n_flows is small & static -> unrolled.
    # TODO(synk): switch to lax.fori_loop + a VMEM scratch for T if n_flows > ~8.
    for j in range(n_flows):
        zwb = pt[j:j + 1, :] + b_ref[j]                   # (1, TILE_B), f32
        for i in range(j):
            # <z_j, w_j> = <z_0, w_j> + sum_{i<j} t_i * <uhat_i, w_j>
            zwb = zwb + c_ref[i, j] * t_rows[i]
        t = jnp.tanh(zwb)                                 # EUP, lane-dense
        t_rows.append(t)
        psi_u = (1.0 - t * t) * wu_ref[j]                 # (1, TILE_B)
        ld_rows.append(jnp.log(jnp.abs(1.0 + psi_u) + 1e-8))

    # One dense (n, TILE_B) store for every flow's log|det J| (no per-flow
    # sublane-masked partial stores).
    logdet_ref[...] = jnp.concatenate(ld_rows, axis=0)

    # z_out = z_0 + T^T @ Uhat : the only other tile-sized pass (MXU,
    # contraction over the flow axis).
    t_all = jnp.concatenate(t_rows, axis=0)               # (n, TILE_B) f32
    upd = lax.dot_general(
        t_all.astype(uhat_ref.dtype), uhat_ref[...],
        dimension_numbers=(((0,), (0,)), ((), ())),       # T^T (TB,n) . Uhat (n,F)
        preferred_element_type=f32)                       # (TILE_B, F)
    zout_ref[...] = (z_ref[...].astype(f32) + upd).astype(zout_ref.dtype)


def _pick_tile_b(batch, features, itemsize, target_block_bytes=1 << 20,
                 tile_b_max=8192):
    """Byte-budgeted batch tile.

    When the batch is tiled (tile_b != B) the log-det output block is
    (n, tile_b), so tile_b must be a multiple of 128 (lane dim); that is the
    layout floor, the byte budget is applied first.
    """
    row_bytes = max(1, features * itemsize)
    tb = (target_block_bytes // row_bytes) // 128 * 128
    tb = max(128, min(tile_b_max, tb))
    # Guarantee >= 2 grid steps for larger batches so the "parallel" batch axis
    # actually splits across both TensorCores on v7x (no cost on v5e/v6e).
    if batch > 2 * 128:
        half = -(-batch // 2)
        half = -(-half // 128) * 128
        tb = min(tb, half)
    if batch <= tb:
        return batch          # single full block (block dims == array dims)
    return tb


@functools.partial(jax.jit, static_argnames=("tile_b",))
def normalizing_flows(z, u, w, b, *, tile_b=None):
    """z: (B, F); u, w: (n, F); b: (n,) (or (n, 1)).

    Returns (f_z (B, F), [logdet_0, ..., logdet_{n-1}] each (B,)), matching
    NormalizingFlows.forward (a stack of PlanarNormalizingFlow modules).
    """
    B, F = z.shape
    n = u.shape[0]

    # Per-flow parameter precompute (O(n*F), tiny) done once in the wrapper.
    u32 = u.astype(jnp.float32)
    w32 = w.astype(jnp.float32)
    uw = jnp.sum(u32 * w32, axis=-1, keepdims=True)                       # (n, 1)
    muw = -1.0 + jax.nn.softplus(uw)
    uhat = u32 + (muw - uw) * w32 / jnp.sum(w32 * w32, axis=-1, keepdims=True)
    wu = jnp.sum(w32 * uhat, axis=-1)                                     # (n,)   <w_j, uhat_j>
    c = uhat @ w32.T                                                      # (n, n) C[i, j] = <uhat_i, w_j>
    b32 = b.reshape(-1).astype(jnp.float32)                               # (n,)

    # Matmul operands in the I/O dtype: bf16 callers keep bf16 on the MXU
    # (f32 accumulation); the recurrence scalars stay f32 in SMEM.
    w_mm = w32.astype(z.dtype)
    uhat_mm = uhat.astype(z.dtype)

    itemsize = jnp.dtype(z.dtype).itemsize
    if tile_b is None:
        tile_b = _pick_tile_b(B, F, itemsize)
    grid = (pl.cdiv(B, tile_b),)

    # VMEM budget: double-buffered z-in + z-out + logdet blocks, plus in-kernel
    # f32 temps (pt, T, upd).  Capped with headroom for v7x's 64 MiB physical.
    z_blk = tile_b * F * itemsize
    ld_blk = n * tile_b * 4
    est = 2 * (2 * z_blk + ld_blk) + 2 * tile_b * F * 4 + 6 * n * tile_b * 4
    vmem_limit = int(min(max(2 * est, 32 << 20), 48 << 20))

    zout, logdets = pl.pallas_call(
        _flows_kernel,
        out_shape=(
            jax.ShapeDtypeStruct((B, F), z.dtype),
            jax.ShapeDtypeStruct((n, B), jnp.float32),
        ),
        grid=grid,
        in_specs=[
            # z batch tile; double-buffered by the pipeline.  (On v7x a
            # pipeline_mode=pl.Buffered(3) sweep may hide a bit more DMA setup.)
            pl.BlockSpec((tile_b, F), lambda i: (i, 0)),
            pl.BlockSpec((n, F), lambda i: (0, 0)),                   # W    (resident)
            pl.BlockSpec((n, F), lambda i: (0, 0)),                   # Uhat (resident)
            pl.BlockSpec(memory_space=pltpu.MemorySpace.SMEM),        # C[i, j] = <uhat_i, w_j>
            pl.BlockSpec(memory_space=pltpu.MemorySpace.SMEM),        # <w_j, uhat_j>
            pl.BlockSpec(memory_space=pltpu.MemorySpace.SMEM),        # b_j
        ],
        out_specs=(
            pl.BlockSpec((tile_b, F), lambda i: (i, 0)),              # f_z tile
            pl.BlockSpec((n, tile_b), lambda i: (0, i)),              # lane-dense logdets
        ),
        compiler_params=pltpu.CompilerParams(
            dimension_semantics=("parallel",),
            vmem_limit_bytes=vmem_limit,
        ),
    )(z, w_mm, uhat_mm, c, wu, b32)

    # (n, B) -> contiguous row slices (no strided column gathers).
    return zout, [logdets[i] for i in range(n)]


def _reference(z, u, w, b):
    """Pure-JAX replica of the PyTorch forward, for verification."""
    log_dets = []
    for i in range(u.shape[0]):
        ui, wi, bi = u[i], w[i], b[i]
        uw = jnp.dot(ui, wi)
        muw = -1.0 + jax.nn.softplus(uw)
        uhat = ui + (muw - uw) * wi / jnp.sum(wi ** 2)
        zwb = z @ wi + bi
        t = jnp.tanh(zwb)
        f_z = z + uhat[None, :] * t[:, None]
        psi = (1.0 - t ** 2)[:, None] * wi[None, :]
        psi_u = psi @ uhat
        log_dets.append(jnp.log(jnp.abs(1.0 + psi_u) + 1e-8))
        z = f_z
    return z, log_dets


if __name__ == "__main__":
    n_flows = 3
    batch = 8
    features = 32

    key = jax.random.PRNGKey(0)
    kz, ku, kw = jax.random.split(key, 3)

    z = jax.random.normal(kz, (batch, features), dtype=jnp.float32)
    # Moderate parameter scale keeps 1 + psi^T u well away from 0:
    # log|1 + psi^T u| has unbounded condition number there, which would turn
    # benign f32 reassociation differences between the fused kernel and the
    # sequential reference into spurious mismatches.
    u = 0.3 * jax.random.normal(ku, (n_flows, features), dtype=jnp.float32)
    w = 0.3 * jax.random.normal(kw, (n_flows, features), dtype=jnp.float32)
    b = jnp.ones((n_flows,), dtype=jnp.float32)

    f_z, log_dets = normalizing_flows(z, u, w, b)
    f_z = jax.block_until_ready(f_z)
    log_dets = [jax.block_until_ready(ld) for ld in log_dets]

    f_z_ref, log_dets_ref = _reference(z, u, w, b)
    assert jnp.allclose(f_z, f_z_ref, atol=1e-4, rtol=1e-4), "f_z mismatch"
    for a, r in zip(log_dets, log_dets_ref):
        assert jnp.allclose(a, r, atol=1e-3, rtol=1e-3), "logdet mismatch"

    # Multi-tile grid + partial final block path (300 rows = 2 full tiles + 44).
    z2 = jax.random.normal(jax.random.PRNGKey(1), (300, features),
                           dtype=jnp.float32)
    f_z2, log_dets2 = normalizing_flows(z2, u, w, b, tile_b=128)
    f_z2 = jax.block_until_ready(f_z2)
    f_z2_ref, log_dets2_ref = _reference(z2, u, w, b)
    assert jnp.allclose(f_z2, f_z2_ref, atol=1e-4, rtol=1e-4), "f_z mismatch (tiled)"
    for a, r in zip(log_dets2, log_dets2_ref):
        assert jnp.allclose(a, r, atol=1e-3, rtol=1e-3), "logdet mismatch (tiled)"

    print("KERNEL_OK")
</pallas_src>

<mosaic_0001>
module attributes {stable_mosaic.version = 11 : i64} {
  func.func @_flows_kernel(%arg0: i32, %arg1: memref<8x32xf32, #tpu.memory_space<vmem>>, %arg2: memref<3x32xf32, #tpu.memory_space<vmem>>, %arg3: memref<3x32xf32, #tpu.memory_space<vmem>>, %arg4: memref<3x3xf32, #tpu.memory_space<smem>>, %arg5: memref<3xf32, #tpu.memory_space<smem>>, %arg6: memref<3xf32, #tpu.memory_space<smem>>, %arg7: memref<8x32xf32, #tpu.memory_space<vmem>>, %arg8: memref<3x8xf32, #tpu.memory_space<vmem>>) attributes {dimension_semantics = [#tpu.dimension_semantics<parallel>], iteration_bounds = array<i64: 1>, scalar_prefetch = 0 : i64, scratch_operands = 0 : i64, tpu.core_type = #tpu.core_type<tc>, window_params = [{transform_indices = @transform_0, window_bounds = array<i64: 8, 32>}, {pipeline_mode = #tpu.pipeline_mode<synchronous>, transform_indices = @transform_1, window_bounds = array<i64: 3, 32>}, {pipeline_mode = #tpu.pipeline_mode<synchronous>, transform_indices = @transform_2, window_bounds = array<i64: 3, 32>}, {transform_indices = @transform_3, window_bounds = array<i64: 3, 3>}, {transform_indices = @transform_4, window_bounds = array<i64: 3>}, {transform_indices = @transform_5, window_bounds = array<i64: 3>}, {transform_indices = @transform_6, window_bounds = array<i64: 8, 32>}, {transform_indices = @transform_7, window_bounds = array<i64: 3, 8>}]} {
    %c0 = arith.constant 0 : index
    %c0_0 = arith.constant 0 : index
    %0 = vector.load %arg2[%c0, %c0_0] : memref<3x32xf32, #tpu.memory_space<vmem>>, vector<3x32xf32>
    %c0_1 = arith.constant 0 : index
    %c0_2 = arith.constant 0 : index
    %1 = vector.load %arg1[%c0_1, %c0_2] : memref<8x32xf32, #tpu.memory_space<vmem>>, vector<8x32xf32>
    %cst = arith.constant dense<0.000000e+00> : vector<3x8xf32>
    %2 = tpu.matmul %0, %1, %cst {dimension_numbers = #tpu.dot_dimension_numbers<[1], [1], [0], [0], [0, 0, 1, 0], [], []>} : vector<3x32xf32>, vector<8x32xf32>, vector<3x8xf32> -> vector<3x8xf32>
    %3 = vector.extract_strided_slice %2 {offsets = [0, 0], sizes = [1, 8], strides = [1, 1]} : vector<3x8xf32> to vector<1x8xf32>
    %c0_3 = arith.constant 0 : index
    %4 = memref.load %arg6[%c0_3] : memref<3xf32, #tpu.memory_space<smem>>
    %5 = vector.broadcast %4 : f32 to vector<1x8xf32>
    %6 = arith.addf %3, %5 : vector<1x8xf32>
    %7 = math.tanh %6 : vector<1x8xf32>
    %8 = arith.mulf %7, %7 : vector<1x8xf32>
    %cst_4 = arith.constant 1.000000e+00 : f32
    %9 = vector.broadcast %cst_4 : f32 to vector<1x8xf32>
    %10 = arith.subf %9, %8 : vector<1x8xf32>
    %c0_5 = arith.constant 0 : index
    %11 = memref.load %arg5[%c0_5] : memref<3xf32, #tpu.memory_space<smem>>
    %12 = vector.broadcast %11 : f32 to vector<1x8xf32>
    %13 = arith.mulf %10, %12 : vector<1x8xf32>
    %cst_6 = arith.constant 1.000000e+00 : f32
    %14 = vector.broadcast %cst_6 : f32 to vector<1x8xf32>
    %15 = arith.addf %14, %13 : vector<1x8xf32>
    %16 = math.absf %15 : vector<1x8xf32>
    %cst_7 = arith.constant 9.99999993E-9 : f32
    %17 = vector.broadcast %cst_7 : f32 to vector<1x8xf32>
    %18 = arith.addf %16, %17 : vector<1x8xf32>
    %19 = math.log %18 : vector<1x8xf32>
    %20 = vector.extract_strided_slice %2 {offsets = [1, 0], sizes = [1, 8], strides = [1, 1]} : vector<3x8xf32> to vector<1x8xf32>
    %c1 = arith.constant 1 : index
    %21 = memref.load %arg6[%c1] : memref<3xf32, #tpu.memory_space<smem>>
    %22 = vector.broadcast %21 : f32 to vector<1x8xf32>
    %23 = arith.addf %20, %22 : vector<1x8xf32>
    %c0_8 = arith.constant 0 : index
    %c1_9 = arith.constant 1 : index
    %24 = memref.load %arg4[%c0_8, %c1_9] : memref<3x3xf32, #tpu.memory_space<smem>>
    %25 = vector.broadcast %24 : f32 to vector<1x8xf32>
    %26 = arith.mulf %25, %7 : vector<1x8xf32>
    %27 = arith.addf %23, %26 : vector<1x8xf32>
    %28 = math.tanh %27 : vector<1x8xf32>
    %29 = arith.mulf %28, %28 : vector<1x8xf32>
    %cst_10 = arith.constant 1.000000e+00 : f32
    %30 = vector.broadcast %cst_10 : f32 to vector<1x8xf32>
    %31 = arith.subf %30, %29 : vector<1x8xf32>
    %c1_11 = arith.constant 1 : index
    %32 = memref.load %arg5[%c1_11] : memref<3xf32, #tpu.memory_space<smem>>
    %33 = vector.broadcast %32 : f32 to vector<1x8xf32>
    %34 = arith.mulf %31, %33 : vector<1x8xf32>
    %cst_12 = arith.constant 1.000000e+00 : f32
    %35 = vector.broadcast %cst_12 : f32 to vector<1x8xf32>
    %36 = arith.addf %35, %34 : vector<1x8xf32>
    %37 = math.absf %36 : vector<1x8xf32>
    %cst_13 = arith.constant 9.99999993E-9 : f32
    %38 = vector.broadcast %cst_13 : f32 to vector<1x8xf32>
    %39 = arith.addf %37, %38 : vector<1x8xf32>
    %40 = math.log %39 : vector<1x8xf32>
    %41 = vector.extract_strided_slice %2 {offsets = [2, 0], sizes = [1, 8], strides = [1, 1]} : vector<3x8xf32> to vector<1x8xf32>
    %c2 = arith.constant 2 : index
    %42 = memref.load %arg6[%c2] : memref<3xf32, #tpu.memory_space<smem>>
    %43 = vector.broadcast %42 : f32 to vector<1x8xf32>
    %44 = arith.addf %41, %43 : vector<1x8xf32>
    %c0_14 = arith.constant 0 : index
    %c2_15 = arith.constant 2 : index
    %45 = memref.load %arg4[%c0_14, %c2_15] : memref<3x3xf32, #tpu.memory_space<smem>>
    %46 = vector.broadcast %45 : f32 to vector<1x8xf32>
    %47 = arith.mulf %46, %7 : vector<1x8xf32>
    %48 = arith.addf %44, %47 : vector<1x8xf32>
    %c1_16 = arith.constant 1 : index
    %c2_17 = arith.constant 2 : index
    %49 = memref.load %arg4[%c1_16, %c2_17] : memref<3x3xf32, #tpu.memory_space<smem>>
    %50 = vector.broadcast %49 : f32 to vector<1x8xf32>
    %51 = arith.mulf %50, %28 : vector<1x8xf32>
    %52 = arith.addf %48, %51 : vector<1x8xf32>
    %53 = math.tanh %52 : vector<1x8xf32>
    %54 = arith.mulf %53, %53 : vector<1x8xf32>
    %cst_18 = arith.constant 1.000000e+00 : f32
    %55 = vector.broadcast %cst_18 : f32 to vector<1x8xf32>
    %56 = arith.subf %55, %54 : vector<1x8xf32>
    %c2_19 = arith.constant 2 : index
    %57 = memref.load %arg5[%c2_19] : memref<3xf32, #tpu.memory_space<smem>>
    %58 = vector.broadcast %57 : f32 to vector<1x8xf32>
    %59 = arith.mulf %56, %58 : vector<1x8xf32>
    %cst_20 = arith.constant 1.000000e+00 : f32
    %60 = vector.broadcast %cst_20 : f32 to vector<1x8xf32>
    %61 = arith.addf %60, %59 : vector<1x8xf32>
    %62 = math.absf %61 : vector<1x8xf32>
    %cst_21 = arith.constant 9.99999993E-9 : f32
    %63 = vector.broadcast %cst_21 : f32 to vector<1x8xf32>
    %64 = arith.addf %62, %63 : vector<1x8xf32>
    %65 = math.log %64 : vector<1x8xf32>
    %66 = tpu.concatenate %19, %40, %65 in 0 : vector<1x8xf32>, vector<1x8xf32>, vector<1x8xf32> -> vector<3x8xf32>
    %c0_22 = arith.constant 0 : index
    %c0_23 = arith.constant 0 : index
    %67 = vector.load %arg8[%c0_22, %c0_23] : memref<3x8xf32, #tpu.memory_space<vmem>>, vector<3x8xf32>
    tpu.vector_store %arg8[%c0_22, %c0_23], %66 {strides = array<i32>} : memref<3x8xf32, #tpu.memory_space<vmem>>, vector<3x8xf32>,
    %68 = tpu.concatenate %7, %28, %53 in 0 : vector<1x8xf32>, vector<1x8xf32>, vector<1x8xf32> -> vector<3x8xf32>
    %c0_24 = arith.constant 0 : index
    %c0_25 = arith.constant 0 : index
    %69 = vector.load %arg3[%c0_24, %c0_25] : memref<3x32xf32, #tpu.memory_space<vmem>>, vector<3x32xf32>
    %cst_26 = arith.constant dense<0.000000e+00> : vector<8x32xf32>
    %70 = tpu.matmul %68, %69, %cst_26 {dimension_numbers = #tpu.dot_dimension_numbers<[0], [0], [1], [1], [0, 1, 1, 1], [], []>} : vector<3x8xf32>, vector<3x32xf32>, vector<8x32xf32> -> vector<8x32xf32>
    %c0_27 = arith.constant 0 : index
    %c0_28 = arith.constant 0 : index
    %71 = vector.load %arg1[%c0_27, %c0_28] : memref<8x32xf32, #tpu.memory_space<vmem>>, vector<8x32xf32>
    %72 = arith.addf %71, %70 : vector<8x32xf32>
    %c0_29 = arith.constant 0 : index
    %c0_30 = arith.constant 0 : index
    %73 = vector.load %arg7[%c0_29, %c0_30] : memref<8x32xf32, #tpu.memory_space<vmem>>, vector<8x32xf32>
    tpu.vector_store %arg7[%c0_29, %c0_30], %72 {strides = array<i32>} : memref<8x32xf32, #tpu.memory_space<vmem>>, vector<8x32xf32>,
    return
  }
  func.func @transform_0(%arg0: i32) -> (i32, i32) {
    %c0_i32 = arith.constant 0 : i32
    %c0_i32_0 = arith.constant 0 : i32
    return %arg0, %c0_i32 : i32, i32
  }
  func.func @transform_1(%arg0: i32) -> (i32, i32) {
    %c0_i32 = arith.constant 0 : i32
    %c0_i32_0 = arith.constant 0 : i32
    %c0_i32_1 = arith.constant 0 : i32
    return %c0_i32, %c0_i32_0 : i32, i32
  }
  func.func @transform_2(%arg0: i32) -> (i32, i32) {
    %c0_i32 = arith.constant 0 : i32
    %c0_i32_0 = arith.constant 0 : i32
    %c0_i32_1 = arith.constant 0 : i32
    return %c0_i32, %c0_i32_0 : i32, i32
  }
  func.func @transform_3(%arg0: i32) -> (i32, i32) {
    %c0_i32 = arith.constant 0 : i32
    %c0_i32_0 = arith.constant 0 : i32
    %c0_i32_1 = arith.constant 0 : i32
    return %c0_i32, %c0_i32_0 : i32, i32
  }
  func.func @transform_4(%arg0: i32) -> i32 {
    %c0_i32 = arith.constant 0 : i32
    %c0_i32_0 = arith.constant 0 : i32
    return %c0_i32 : i32
  }
  func.func @transform_5(%arg0: i32) -> i32 {
    %c0_i32 = arith.constant 0 : i32
    %c0_i32_0 = arith.constant 0 : i32
    return %c0_i32 : i32
  }
  func.func @transform_6(%arg0: i32) -> (i32, i32) {
    %c0_i32 = arith.constant 0 : i32
    %c0_i32_0 = arith.constant 0 : i32
    return %arg0, %c0_i32 : i32, i32
  }
  func.func @transform_7(%arg0: i32) -> (i32, i32) {
    %c0_i32 = arith.constant 0 : i32
    %c0_i32_0 = arith.constant 0 : i32
    return %c0_i32, %arg0 : i32, i32
  }
}

</mosaic_0001>

<llo_original>
// kernel: normalizing_flows.1
$region0: #{normalizing_flows.1}
  #allocation0 [shape = 'u32[]', space=smem, size = 0x4, offset = 0x4, fixed_abs, tag = 'smem constant byte address 0x4 - core index']
  #allocation1 [shape = 'u32[72,128]{1,0:T(1,128)}', space=vmem, size = 0x9000, scoped, tag = 'internal scratch']
  %s0 = inlined_call_operand.vmem [shape: f32[8,32], index: 0, kind: input, shape index: {}]
  %s1 = inlined_call_operand.vmem [shape: f32[3,32], index: 1, kind: input, shape index: {}]
  %s2 = inlined_call_operand.vmem [shape: f32[3,32], index: 2, kind: input, shape index: {}]
  %s3 = inlined_call_operand.vmem [shape: f32[3,3], index: 3, kind: input, shape index: {}]
  %s4 = inlined_call_operand.vmem [shape: f32[3], index: 4, kind: input, shape index: {}]
  %s5 = inlined_call_operand.vmem [shape: f32[3], index: 5, kind: input, shape index: {}]
  %s6 = inlined_call_operand.hbm [shape: f32[8,32], index: 6, kind: output, shape index: {0}]
  %s7 = inlined_call_operand.vmem [shape: f32[3,8], index: 7, kind: output, shape index: {1}]
  %8 = xla_tuple %s6, %s7
  %s9 = sld [smem:[#allocation0]]
  $region54: #{normalizing_flows.1} parent=0
    _
  %s11 = ssub.s32 1, %s9
  %s12 = scalar_select 0, %s11, %s9
  $region1: #{normalizing_flows.1} parent=0
    #allocation2 [shape = 'u8[2048]{0}', space=smem, size = 0x800, scoped, tag = 'input window, operand 3, single buffered']
    #allocation3 [shape = 's32[1]{0}', space=sflag, size = 0x4, scoped, tag = 'scoped memory for normalizing_flows.1']
    #allocation4 [shape = 's32[1]{0}', space=sflag, size = 0x4, scoped, tag = 'scoped memory for normalizing_flows.1']
    #allocation5 [shape = 'u8[512]{0}', space=smem, size = 0x200, scoped, tag = 'input window, operand 4, single buffered']
    #allocation6 [shape = 's32[1]{0}', space=sflag, size = 0x4, scoped, tag = 'scoped memory for normalizing_flows.1']
    #allocation7 [shape = 'u8[512]{0}', space=smem, size = 0x200, scoped, tag = 'input window, operand 5, single buffered']
    #allocation8 [shape = 'u8[4096]{0}', space=vmem, size = 0x1000, scoped, tag = 'output window, operand 0, single buffered']
    %13 = vsyncpa [#allocation4], 0
    %14 = vsyncpa [#allocation6], 0
    %15 = vsyncpa [#allocation3], 0
    // Predicated region
    $region2: #{normalizing_flows.1} parent=1 // pred_check
      _
    $region3: #{normalizing_flows.1} parent=1 // pred_check_branch
      %17 = sbr.rel (0) target = $region5
    $region4: #{normalizing_flows.1} parent=1 // pred_region
      _
    $region5: #{normalizing_flows.1} parent=1 // pred_fallthru
      _
    // Predicated region
    $region6: #{normalizing_flows.1} parent=1 // pred_check
      _
    $region7: #{normalizing_flows.1} parent=1 // pred_check_branch
      %19 = sbr.rel (0) target = $region9
    $region8: #{normalizing_flows.1} parent=1 // pred_region
      _
    $region9: #{normalizing_flows.1} parent=1 // pred_fallthru
      _
    // Predicated region
    $region10: #{normalizing_flows.1} parent=1 // pred_check
      _
    $region11: #{normalizing_flows.1} parent=1 // pred_check_branch
      %21 = sbr.rel (0) target = $region13
    $region12: #{normalizing_flows.1} parent=1 // pred_region
      _
    $region13: #{normalizing_flows.1} parent=1 // pred_fallthru
      _
    // Predicated region
    $region14: #{normalizing_flows.1} parent=1 // pred_check
      _
    $region15: #{normalizing_flows.1} parent=1 // pred_check_branch
      %23 = sbr.rel (0) target = $region17
    $region16: #{normalizing_flows.1} parent=1 // pred_region
      %25 = vsyncadd [#allocation4], 0
      %s27 = sshll.u32 %s3, 4
      %s28 = int_to_ptr.vmem [resolvable:$true] %s27
      %30 = dma.vmem_to_smem %s28, 64, [#allocation2], [#allocation4]
    $region17: #{normalizing_flows.1} parent=1 // pred_fallthru
      _
    // Predicated region
    $region18: #{normalizing_flows.1} parent=1 // pred_check
      _
    $region19: #{normalizing_flows.1} parent=1 // pred_check_branch
      %32 = sbr.rel (0) target = $region21
    $region20: #{normalizing_flows.1} parent=1 // pred_region
      %34 = vsyncadd [#allocation6], 0
      %s36 = sshll.u32 %s4, 4
      %s37 = int_to_ptr.vmem [resolvable:$true] %s36
      %39 = dma.vmem_to_smem %s37, 16, [#allocation5], [#allocation6]
    $region21: #{normalizing_flows.1} parent=1 // pred_fallthru
      _
    // Predicated region
    $region22: #{normalizing_flows.1} parent=1 // pred_check
      _
    $region23: #{normalizing_flows.1} parent=1 // pred_check_branch
      %41 = sbr.rel (0) target = $region25
    $region24: #{normalizing_flows.1} parent=1 // pred_region
      %43 = vsyncadd [#allocation6], 0
      %s45 = sshll.u32 %s5, 4
      %s46 = int_to_ptr.vmem [resolvable:$true] %s45
      %48 = dma.vmem_to_smem %s46, 16, [#allocation7], [#allocation6]
    $region25: #{normalizing_flows.1} parent=1 // pred_fallthru
      _
    // Predicated region
    $region26: #{normalizing_flows.1} parent=1 // pred_check
      _
    $region27: #{normalizing_flows.1} parent=1 // pred_check_branch
      %50 = sbr.rel (0) target = $region29
    $region28: #{normalizing_flows.1} parent=1 // pred_region
      %52 = dma.done [#allocation4], 64
    $region29: #{normalizing_flows.1} parent=1 // pred_fallthru
      _
    // Predicated region
    $region30: #{normalizing_flows.1} parent=1 // pred_check
      _
    $region31: #{normalizing_flows.1} parent=1 // pred_check_branch
      %54 = sbr.rel (0) target = $region33
    $region32: #{normalizing_flows.1} parent=1 // pred_region
      %56 = dma.done [#allocation6], 16
    $region33: #{normalizing_flows.1} parent=1 // pred_fallthru
      _
    // Predicated region
    $region34: #{normalizing_flows.1} parent=1 // pred_check
      _
    $region35: #{normalizing_flows.1} parent=1 // pred_check_branch
      %58 = sbr.rel (0) target = $region37
    $region36: #{normalizing_flows.1} parent=1 // pred_region
      %60 = dma.done [#allocation6], 16
    $region37: #{normalizing_flows.1} parent=1 // pred_fallthru
      _
    %61 = sfence
    %v62 = vld [vmem:[%s1] sm:$0x7]
    %v63 = vld [vmem:[%s0] sm:$0xff]
    %vm64 = vcmask 261120
    %v66 = vsel %vm64, %v62, 0
    %v69 = vsel %vm64, %v63, 0
    %71 = vmatpush.xpose.msra.mxu0 0.0
    %72 = vmatpush.xpose.msra.mxu0 0.0
    %73 = vmatpush.xpose.msra.mxu0 0.0
    %74 = vmatpush.xpose.msra.mxu0 0.0
    %75 = vmatpush.xpose.msra.mxu0 0.0
    %76 = vmatpush.xpose.msra.mxu0 0.0
    %77 = vmatpush.xpose.msra.mxu0 0.0
    %78 = vmatpush.xpose.msra.mxu0 0.0
    %79 = vmatpush.xpose.msra.mxu0 0.0
    %80 = vmatpush.xpose.msra.mxu0 0.0
    %81 = vmatpush.xpose.msra.mxu0 0.0
    %82 = vmatpush.xpose.msra.mxu0 0.0
    %83 = vmatpush.xpose.msra.mxu0 0.0
    %84 = vmatpush.xpose.msra.mxu0 0.0
    %85 = vmatpush.xpose.msra.mxu0 0.0
    %86 = vmatpush.xpose.msra.mxu0 %v69
    %87 = vmatmul.f32.gmra.mxu0 %v66
    %v88 = vpop.f32.mrf.mxu0
    %v89 = vadd.f32 0.0, %v88
    %90 = vdwg.mxu0
    %s91 = sld [smem:[#allocation7]]
    %v92 = vstv %s91
    %v93 = vadd.f32 %v89, %v92
    %v94 = vtanh.pop %v93
    %v95 = vmul.f32 %v94, %v94
    %v96 = vsub.f32 1.0, %v95
    %s97 = sld [smem:[#allocation5]]
    %v98 = vstv %s97
    %v99 = vmul.f32 %v96, %v98
    %v100 = vadd.f32 %v99, 1.0
    %v101 = vand.u32 2147483647, %v100
    %v102 = vadd.f32 %v101, 1e-08
    %v103 = vlog2.pop %v102
    %v104 = vmul.f32 %v103, 0.6931472
    %s105 = sld [smem:[#allocation7 + $0x1]]
    %v106 = vstv %s105
    %v107 = vadd.f32 %v89, %v106
    %s108 = sld [smem:[#allocation2 + $0x1]]
    %v109 = vstv %s108
    %v110 = vmul.f32 %v109, %v94
    %v112 = vrot.slane %v110, 7
    %v114 = vadd.f32 %v107, %v112
    %v115 = vtanh.pop %v114
    %v116 = vmul.f32 %v115, %v115
    %v117 = vsub.f32 1.0, %v116
    %s118 = sld [smem:[#allocation5 + $0x1]]
    %v119 = vstv %s118
    %v120 = vmul.f32 %v117, %v119
    %v121 = vadd.f32 %v120, 1.0
    %v122 = vand.u32 2147483647, %v121
    %v123 = vadd.f32 %v122, 1e-08
    %v124 = vlog2.pop %v123
    %v125 = vmul.f32 %v124, 0.6931472
    %s126 = sld [smem:[#allocation7 + $0x2]]
    %v127 = vstv %s126
    %v128 = vadd.f32 %v89, %v127
    %s129 = sld [smem:[#allocation2 + $0x2]]
    %v130 = vstv %s129
    %v131 = vmul.f32 %v130, %v94
    %v133 = vrot.slane %v131, 6
    %v135 = vadd.f32 %v128, %v133
    %s136 = sld [smem:[#allocation2 + $0x82]]
    %v137 = vstv %s136
    %v138 = vmul.f32 %v137, %v115
    %v140 = vrot.slane %v138, 7
    %v142 = vadd.f32 %v135, %v140
    %v143 = vtanh.pop %v142
    %v144 = vmul.f32 %v143, %v143
    %v145 = vsub.f32 1.0, %v144
    %s146 = sld [smem:[#allocation5 + $0x2]]
    %v147 = vstv %s146
    %v148 = vmul.f32 %v145, %v147
    %v149 = vadd.f32 %v148, 1.0
    %v150 = vand.u32 2147483647, %v149
    %v151 = vadd.f32 %v150, 1e-08
    %v152 = vlog2.pop %v151
    %v153 = vmul.f32 %v152, 0.6931472
    %vm154 = vcmask 1040384
    %v155 = vsel %vm154, %v104, %v125
    %vm156 = vcmask 1041408
    %v157 = vsel %vm156, %v155, %v153
    %vm158 = vcmask 59392
    %159 = vst.msk [vmem:[%s7] sm:$0x7] %vm158, %v157
    %v160 = vsel %vm154, %v94, %v115
    %v161 = vsel %vm156, %v160, %v143
    %v162 = vld [vmem:[%s2] sm:$0x7]
    %163 = vxpose.xlu0.b32.start [1/16] %v161, 128
    %164 = vxpose.xlu0.b32.cont [2/16] 0.0, 128
    %165 = vxpose.xlu0.b32.cont [3/16] 0.0, 128
    %166 = vxpose.xlu0.b32.cont [4/16] 0.0, 128
    %167 = vxpose.xlu0.b32.cont [5/16] 0.0, 128
    %168 = vxpose.xlu0.b32.cont [6/16] 0.0, 128
    %169 = vxpose.xlu0.b32.cont [7/16] 0.0, 128
    %170 = vxpose.xlu0.b32.cont [8/16] 0.0, 128
    %171 = vxpose.xlu0.b32.cont [9/16] 0.0, 128
    %172 = vxpose.xlu0.b32.cont [10/16] 0.0, 128
    %173 = vxpose.xlu0.b32.cont [11/16] 0.0, 128
    %174 = vxpose.xlu0.b32.cont [12/16] 0.0, 128
    %175 = vxpose.xlu0.b32.cont [13/16] 0.0, 128
    %176 = vxpose.xlu0.b32.cont [14/16] 0.0, 128
    %177 = vxpose.xlu0.b32.cont [15/16] 0.0, 128
    %178 = vxpose.xlu0.b32.end [16/16] 0.0, 128
    %v179 = vpop.trf.xlu0
    %v180 = vpop.trf.xlu0
    %v181 = vpop.trf.xlu0
    %v182 = vpop.trf.xlu0
    %v183 = vpop.trf.xlu0
    %v184 = vpop.trf.xlu0
    %v185 = vpop.trf.xlu0
    %v186 = vpop.trf.xlu0
    %v187 = vpop.trf.xlu0
    %v188 = vpop.trf.xlu0
    %v189 = vpop.trf.xlu0
    %v190 = vpop.trf.xlu0
    %v191 = vpop.trf.xlu0
    %v192 = vpop.trf.xlu0
    %v193 = vpop.trf.xlu0
    %v194 = vpop.trf.xlu0
    %vm195 = vcmask 23552
    %v197 = vsel %vm195, %v179, 0
    %vm199 = vcmask 1042432
    %v201 = vsel %vm199, %v162, 0
    %203 = vmatpush.msra.mxu0 0.0
    %204 = vmatpush.msra.mxu0 0.0
    %205 = vmatpush.msra.mxu0 0.0
    %206 = vmatpush.msra.mxu0 0.0
    %207 = vmatpush.msra.mxu0 0.0
    %208 = vmatpush.msra.mxu0 0.0
    %209 = vmatpush.msra.mxu0 0.0
    %210 = vmatpush.msra.mxu0 0.0
    %211 = vmatpush.msra.mxu0 0.0
    %212 = vmatpush.msra.mxu0 0.0
    %213 = vmatpush.msra.mxu0 0.0
    %214 = vmatpush.msra.mxu0 0.0
    %215 = vmatpush.msra.mxu0 0.0
    %216 = vmatpush.msra.mxu0 0.0
    %217 = vmatpush.msra.mxu0 0.0
    %218 = vmatpush.msra.mxu0 %v201
    %219 = vmatmul.f32.gmra.mxu0 %v197
    %v220 = vpop.f32.mrf.mxu0
    %v221 = vadd.f32 0.0, %v220
    %222 = vdwg.mxu0
    %v223 = vld [vmem:[%s0] sm:$0xff]
    %v224 = vadd.f32 %v223, %v221
    %225 = vst.msk [vmem:[#allocation8] sm:$0xff] %vm64, %v224
    // Predicated region
    $region38: #{normalizing_flows.1} parent=1 // pred_check
      _
    $region39: #{normalizing_flows.1} parent=1 // pred_check_branch
      %227 = sbr.rel (0) target = $region41
    $region40: #{normalizing_flows.1} parent=1 // pred_region
      %229 = vsyncadd [#allocation3], 0
      %s231 = sshll.u32 [#allocation8], 4
      %s232 = int_to_ptr.vmem [resolvable:$true] %s231
      %s233 = sshll.u32 %s6, 4
      %s234 = int_to_ptr.hbm [resolvable:$true] %s233
      %236 = dma.vmem_to_hbm [thread:$0]  %s232, 128, %s234, [#allocation3]
    $region41: #{normalizing_flows.1} parent=1 // pred_fallthru
      _
    // Predicated region
    $region42: #{normalizing_flows.1} parent=1 // pred_check
      _
    $region43: #{normalizing_flows.1} parent=1 // pred_check_branch
      %238 = sbr.rel (0) target = $region45
    $region44: #{normalizing_flows.1} parent=1 // pred_region
      _
    $region45: #{normalizing_flows.1} parent=1 // pred_fallthru
      _
    // Predicated region
    $region46: #{normalizing_flows.1} parent=1 // pred_check
      _
    $region47: #{normalizing_flows.1} parent=1 // pred_check_branch
      %240 = sbr.rel (0) target = $region49
    $region48: #{normalizing_flows.1} parent=1 // pred_region
      %242 = dma.done [#allocation3], 128
    $region49: #{normalizing_flows.1} parent=1 // pred_fallthru
      _
    // Predicated region
    $region50: #{normalizing_flows.1} parent=1 // pred_check
      _
    $region51: #{normalizing_flows.1} parent=1 // pred_check_branch
      %244 = sbr.rel (0) target = $region53
    $region52: #{normalizing_flows.1} parent=1 // pred_region
      _
    $region53: #{normalizing_flows.1} parent=1 // pred_fallthru
      _
    %245 = vsyncpa [#allocation3], 1
    %246 = vsyncpa [#allocation4], 1
    %247 = vsyncpa [#allocation6], 1

</llo_original>
